<compile_context>
chip_gen: v5e
topology: v5e:2x2
jax: 0.10.0
libtpu: 0.0.40
codegen_flags: <defaults>
</compile_context>

<pallas_src>
import math

import jax
import jax.numpy as jnp
from jax import lax
from jax.experimental import pallas as pl
from jax.experimental.pallas import tpu as pltpu


# -----------------------------------------------------------------------------
# Native-layout path: x block (Bt, in_nodes, C), out block (Bt, out_nodes, C).
# -----------------------------------------------------------------------------
def _unpool_kernel_native(x_ref, w_ref, b_ref, o_ref):
    w = w_ref[...]        # (out_nodes, in_nodes), resident across grid steps
    bias = b_ref[...]     # (out_nodes, 1), broadcasts along the lane axis

    def body(b, carry):
        # Small MXU matmul per batch row; the kernel is HBM-bound so this
        # compute is filler under DMA slack.
        y = jnp.dot(w, x_ref[b], preferred_element_type=jnp.float32)
        o_ref[b] = (y + bias).astype(o_ref.dtype)
        return carry

    lax.fori_loop(0, x_ref.shape[0], body, 0)


# -----------------------------------------------------------------------------
# Fallback path (C % 128 != 0): one lane-dense GEMM over (in_nodes, B*C).
# -----------------------------------------------------------------------------
def _unpool_kernel_flat(x_ref, w_ref, b_ref, o_ref):
    y = jnp.dot(w_ref[...], x_ref[...], preferred_element_type=jnp.float32)
    o_ref[...] = (y + b_ref[...]).astype(o_ref.dtype)


def _pick_batch_tile(B, in_nodes, out_nodes, C, itemsize,
                     vmem_budget_bytes=6 << 20):
    """Largest batch tile whose (x + out) blocks fit ~6 MiB single-buffered."""
    per_batch = (in_nodes + out_nodes) * C * itemsize
    bt = max(1, vmem_budget_bytes // per_batch)
    return int(min(B, bt))


def _pick_lane_tile(n, cap=65536):
    """Full-extent block when small; otherwise a fixed multiple-of-128 tile.

    cap=65536 keeps the double-buffered footprint (~12 MiB for f32 in+out)
    under v5e's 16 MiB default scoped VMEM; ragged last block is masked.
    """
    if n <= cap:
        return n
    return cap


def graph_unpool(x, weight, bias):
    """x: (B, in_nodes, C), weight: (out_nodes, in_nodes), bias: (out_nodes,).

    Returns (B, out_nodes, C), matching GraphUnpool.forward.
    """
    B, in_nodes, C = x.shape
    out_nodes = weight.shape[0]
    bias2d = bias.reshape(out_nodes, 1)
    itemsize = jnp.dtype(x.dtype).itemsize

    if C % 128 == 0:
        # Native layout: no wrapper transposes, batch-tiled grid.
        bt = _pick_batch_tile(B, in_nodes, out_nodes, C, itemsize)
        return pl.pallas_call(
            _unpool_kernel_native,
            out_shape=jax.ShapeDtypeStruct((B, out_nodes, C), x.dtype),
            grid_spec=pltpu.PrefetchScalarGridSpec(
                num_scalar_prefetch=0,
                grid=(pl.cdiv(B, bt),),
                in_specs=[
                    pl.BlockSpec((bt, in_nodes, C), lambda i: (i, 0, 0)),
                    pl.BlockSpec((out_nodes, in_nodes), lambda i: (0, 0)),
                    pl.BlockSpec((out_nodes, 1), lambda i: (0, 0)),
                ],
                out_specs=pl.BlockSpec((bt, out_nodes, C), lambda i: (i, 0, 0)),
            ),
            compiler_params=pltpu.CompilerParams(
                dimension_semantics=("parallel",)),
        )(x, weight, bias2d)

    # Fallback for non-lane-aligned C: flatten to a lane-dense 2D GEMM
    #   Y(out_nodes, B*C) = W(out_nodes, in_nodes) @ X2(in_nodes, B*C) + bias.
    N = B * C
    x2 = jnp.transpose(x, (1, 0, 2)).reshape(in_nodes, N)
    nt = _pick_lane_tile(N)
    out2 = pl.pallas_call(
        _unpool_kernel_flat,
        out_shape=jax.ShapeDtypeStruct((out_nodes, N), x.dtype),
        grid_spec=pltpu.PrefetchScalarGridSpec(
            num_scalar_prefetch=0,
            grid=(pl.cdiv(N, nt),),
            in_specs=[
                pl.BlockSpec((in_nodes, nt), lambda n: (0, n)),
                pl.BlockSpec((out_nodes, in_nodes), lambda n: (0, 0)),
                pl.BlockSpec((out_nodes, 1), lambda n: (0, 0)),
            ],
            out_specs=pl.BlockSpec((out_nodes, nt), lambda n: (0, n)),
        ),
        compiler_params=pltpu.CompilerParams(
            dimension_semantics=("parallel",)),
    )(x2, weight, bias2d)
    return jnp.transpose(out2.reshape(out_nodes, B, C), (1, 0, 2))


if __name__ == "__main__":
    # Small shapes consistent with the module: graph unpooling of node features.
    B, in_nodes, out_nodes, C = 2, 8, 16, 128

    key = jax.random.PRNGKey(0)
    kx, kw, kb = jax.random.split(key, 3)

    x = jax.random.normal(kx, (B, in_nodes, C), dtype=jnp.float32)

    # Deterministic nn.Linear-style init: U(-1/sqrt(in), 1/sqrt(in))
    bound = 1.0 / math.sqrt(in_nodes)
    weight = jax.random.uniform(kw, (out_nodes, in_nodes), jnp.float32,
                                minval=-bound, maxval=bound)
    bias = jax.random.uniform(kb, (out_nodes,), jnp.float32,
                              minval=-bound, maxval=bound)

    # Main (native-layout) path.
    out = jax.block_until_ready(graph_unpool(x, weight, bias))
    ref = jnp.einsum("ji,bic->bjc", weight, x) + bias[None, :, None]
    assert out.shape == (B, out_nodes, C)
    assert jnp.allclose(out, ref, atol=1e-5, rtol=1e-5)

    # Sanity-check the C % 128 != 0 fallback path as well (tiny shapes).
    x_small = x[:, :, :96]
    out_small = jax.block_until_ready(graph_unpool(x_small, weight, bias))
    ref_small = jnp.einsum("ji,bic->bjc", weight, x_small) + bias[None, :, None]
    assert jnp.allclose(out_small, ref_small, atol=1e-5, rtol=1e-5)

    print("KERNEL_OK")
</pallas_src>

<mosaic_0001>
module attributes {stable_mosaic.version = 11 : i64} {
  func.func @_unpool_kernel_native(%arg0: i32, %arg1: memref<2x8x128xf32, #tpu.memory_space<vmem>>, %arg2: memref<16x8xf32, #tpu.memory_space<vmem>>, %arg3: memref<16x1xf32, #tpu.memory_space<vmem>>, %arg4: memref<2x16x128xf32, #tpu.memory_space<vmem>>) attributes {dimension_semantics = [#tpu.dimension_semantics<parallel>], iteration_bounds = array<i64: 1>, scalar_prefetch = 0 : i64, scratch_operands = 0 : i64, tpu.core_type = #tpu.core_type<tc>, window_params = [{transform_indices = @transform_0, window_bounds = array<i64: 2, 8, 128>}, {pipeline_mode = #tpu.pipeline_mode<synchronous>, transform_indices = @transform_1, window_bounds = array<i64: 16, 8>}, {pipeline_mode = #tpu.pipeline_mode<synchronous>, transform_indices = @transform_2, window_bounds = array<i64: 16, 1>}, {transform_indices = @transform_3, window_bounds = array<i64: 2, 16, 128>}]} {
    %c0 = arith.constant 0 : index
    %c0_0 = arith.constant 0 : index
    %0 = vector.load %arg2[%c0, %c0_0] : memref<16x8xf32, #tpu.memory_space<vmem>>, vector<16x8xf32>
    %c0_1 = arith.constant 0 : index
    %c0_2 = arith.constant 0 : index
    %1 = vector.load %arg3[%c0_1, %c0_2] : memref<16x1xf32, #tpu.memory_space<vmem>>, vector<16x1xf32>
    %c0_i32 = arith.constant 0 : i32
    %c2_i32 = arith.constant 2 : i32
    %2 = arith.addi %c0_i32, %c2_i32 : i32
    %c1_i32 = arith.constant 1 : i32
    scf.for %arg5 = %c0_i32 to %2 step %c1_i32  : i32 {
      %3 = arith.index_cast %arg5 : i32 to index
      %c0_4 = arith.constant 0 : index
      %c0_5 = arith.constant 0 : index
      %4 = vector.load %arg1[%3, %c0_4, %c0_5] : memref<2x8x128xf32, #tpu.memory_space<vmem>>, vector<1x8x128xf32>
      %5 = vector.shape_cast %4 : vector<1x8x128xf32> to vector<8x128xf32>
      %cst = arith.constant dense<0.000000e+00> : vector<16x128xf32>
      %6 = tpu.matmul %0, %5, %cst {dimension_numbers = #tpu.dot_dimension_numbers<[1], [0], [0], [1], [0, 0, 1, 1], [], []>} : vector<16x8xf32>, vector<8x128xf32>, vector<16x128xf32> -> vector<16x128xf32>
      %7 = vector.broadcast %1 : vector<16x1xf32> to vector<16x128xf32>
      %8 = arith.addf %6, %7 : vector<16x128xf32>
      %9 = arith.index_cast %arg5 : i32 to index
      %c0_6 = arith.constant 0 : index
      %c0_7 = arith.constant 0 : index
      %10 = vector.load %arg4[%9, %c0_6, %c0_7] : memref<2x16x128xf32, #tpu.memory_space<vmem>>, vector<1x16x128xf32>
      %11 = vector.shape_cast %10 : vector<1x16x128xf32> to vector<16x128xf32>
      %12 = vector.shape_cast %8 : vector<16x128xf32> to vector<1x16x128xf32>
      tpu.vector_store %arg4[%9, %c0_6, %c0_7], %12 {strides = array<i32>} : memref<2x16x128xf32, #tpu.memory_space<vmem>>, vector<1x16x128xf32>,
    }
    %c2_i32_3 = arith.constant 2 : i32
    return
  }
  func.func @transform_0(%arg0: i32) -> (i32, i32, i32) {
    %c0_i32 = arith.constant 0 : i32
    %c0_i32_0 = arith.constant 0 : i32
    %c0_i32_1 = arith.constant 0 : i32
    return %arg0, %c0_i32, %c0_i32_0 : i32, i32, i32
  }
  func.func @transform_1(%arg0: i32) -> (i32, i32) {
    %c0_i32 = arith.constant 0 : i32
    %c0_i32_0 = arith.constant 0 : i32
    %c0_i32_1 = arith.constant 0 : i32
    return %c0_i32, %c0_i32_0 : i32, i32
  }
  func.func @transform_2(%arg0: i32) -> (i32, i32) {
    %c0_i32 = arith.constant 0 : i32
    %c0_i32_0 = arith.constant 0 : i32
    %c0_i32_1 = arith.constant 0 : i32
    return %c0_i32, %c0_i32_0 : i32, i32
  }
  func.func @transform_3(%arg0: i32) -> (i32, i32, i32) {
    %c0_i32 = arith.constant 0 : i32
    %c0_i32_0 = arith.constant 0 : i32
    %c0_i32_1 = arith.constant 0 : i32
    return %arg0, %c0_i32, %c0_i32_0 : i32, i32, i32
  }
}

</mosaic_0001>

<llo_original>
// kernel: tpu_custom_call.1
$region0: #{tpu_custom_call.1}
  #allocation0 [shape = 'u32[]', space=smem, size = 0x4, offset = 0x4, fixed_abs, tag = 'smem constant byte address 0x4 - core index']
  #allocation1 [shape = 'u32[72,128]{1,0:T(1,128)}', space=vmem, size = 0x9000, scoped, tag = 'internal scratch']
  %s0 = inlined_call_operand.vmem [shape: f32[2,8,128], index: 0, kind: input, shape index: {}]
  %s1 = inlined_call_operand.vmem [shape: f32[16,8], index: 1, kind: input, shape index: {}]
  %s2 = inlined_call_operand.vmem [shape: f32[16,1], index: 2, kind: input, shape index: {}]
  %s3 = inlined_call_operand.hbm [shape: f32[2,16,128], index: 3, kind: output, shape index: {}]
  %s4 = sld [smem:[#allocation0]]
  $region29: #{tpu_custom_call.1} parent=0
    _
  %s6 = ssub.s32 1, %s4
  %s7 = scalar_select 0, %s6, %s4
  $region1: #{tpu_custom_call.1} parent=0
    #allocation2 [shape = 'u8[16384]{0}', space=vmem, size = 0x4000, scoped, tag = 'output window, operand 0, single buffered']
    #allocation3 [shape = 's32[1]{0}', space=sflag, size = 0x4, scoped, tag = 'scoped memory for tpu_custom_call.1']
    %8 = vsyncpa [#allocation3], 0
    // Predicated region
    $region2: #{tpu_custom_call.1} parent=1 // pred_check
      _
    $region3: #{tpu_custom_call.1} parent=1 // pred_check_branch
      %10 = sbr.rel (0) target = $region5
    $region4: #{tpu_custom_call.1} parent=1 // pred_region
      _
    $region5: #{tpu_custom_call.1} parent=1 // pred_fallthru
      _
    // Predicated region
    $region6: #{tpu_custom_call.1} parent=1 // pred_check
      _
    $region7: #{tpu_custom_call.1} parent=1 // pred_check_branch
      %12 = sbr.rel (0) target = $region9
    $region8: #{tpu_custom_call.1} parent=1 // pred_region
      _
    $region9: #{tpu_custom_call.1} parent=1 // pred_fallthru
      _
    // Predicated region
    $region10: #{tpu_custom_call.1} parent=1 // pred_check
      _
    $region11: #{tpu_custom_call.1} parent=1 // pred_check_branch
      %14 = sbr.rel (0) target = $region13
    $region12: #{tpu_custom_call.1} parent=1 // pred_region
      _
    $region13: #{tpu_custom_call.1} parent=1 // pred_fallthru
      _
    %v15 = vld [vmem:[%s1] sm:$0xff]
    %v16 = vld [vmem:[%s1 + $0x8] sm:$0xff]
    %v17 = vld [vmem:[%s2] sm:$0xff]
    %v18 = vld [vmem:[%s2 + $0x8] sm:$0xff]
    loop: start=0, step=1, limit=2
    $region14: #{tpu_custom_call.1} parent=1 // loop_pre_header
      _
    $region15: #{tpu_custom_call.1} parent=1 // loop_header
      %s20 = sphi 0, %s24
      %p21 = scmp.ge.s32.totalorder %s20, 2
    $region16: #{tpu_custom_call.1} parent=1 // loop_header_branch
      %23 = sbr.rel (%p21) target = $region20
    $region17: #{tpu_custom_call.1} parent=1 // loop_body
      %s25 = smul.u32 %s20, 8
      %s26 = scalar_lea.vmem %s0, %s25
      %v27 = vld [vmem:[%s26] sm:$0xff]
      %29 = vset.pattern.permute.xlu0 0
      %30 = vperm.xlu0 %29, %v17
      %v31 = vpop.permute.xlu0 %30
      %34 = vset.pattern.permute.xlu0 0
      %35 = vperm.xlu0 %34, %v18
      %v36 = vpop.permute.xlu0 %35
      %vm38 = vcmask 64512
      %v40 = vsel %vm38, %v15, 0
      %v43 = vsel %vm38, %v16, 0
      %45 = vmatpush.msra.mxu0 0.0
      %46 = vmatpush.msra.mxu0 0.0
      %47 = vmatpush.msra.mxu0 0.0
      %48 = vmatpush.msra.mxu0 0.0
      %49 = vmatpush.msra.mxu0 0.0
      %50 = vmatpush.msra.mxu0 0.0
      %51 = vmatpush.msra.mxu0 0.0
      %52 = vmatpush.msra.mxu0 0.0
      %53 = vmatpush.msra.mxu0 0.0
      %54 = vmatpush.msra.mxu0 0.0
      %55 = vmatpush.msra.mxu0 0.0
      %56 = vmatpush.msra.mxu0 0.0
      %57 = vmatpush.msra.mxu0 0.0
      %58 = vmatpush.msra.mxu0 0.0
      %59 = vmatpush.msra.mxu0 0.0
      %60 = vmatpush.msra.mxu0 %v27
      %61 = vmatmul.f32.gmra.mxu0 %v40
      %v62 = vpop.f32.mrf.mxu0
      %v63 = vadd.f32 %v31, %v62
      %64 = vmatmul.f32.gmra.mxu0 %v43
      %v65 = vpop.f32.mrf.mxu0
      %v66 = vadd.f32 %v36, %v65
      %67 = vdwg.mxu0
      %s68 = smul.u32 %s20, 16
      %s69 = scalar_lea.vmem [#allocation2], %s68
      %70 = vst [vmem:[%s69] sm:$0xff] %v63
      %71 = vst [vmem:[%s69 + $0x8] sm:$0xff] %v66
    $region18: #{tpu_custom_call.1} parent=1 // loop_footer
      %s24 = sadd.s32 1, %s20
    $region19: #{tpu_custom_call.1} parent=1 // loop_footer_branch
      %19 = sbr.rel target = $region15
    $region20: #{tpu_custom_call.1} parent=1 // loop_exit
      _
    // Predicated region
    $region21: #{tpu_custom_call.1} parent=1 // pred_check
      _
    $region22: #{tpu_custom_call.1} parent=1 // pred_check_branch
      %73 = sbr.rel (0) target = $region24
    $region23: #{tpu_custom_call.1} parent=1 // pred_region
      %75 = vsyncadd [#allocation3], 0
      %s76 = sshll.u32 [#allocation2], 4
      %s77 = int_to_ptr.vmem [resolvable:$true] %s76
      %s78 = sshll.u32 %s3, 4
      %s79 = int_to_ptr.hbm [resolvable:$true] %s78
      %84 = dma.vmem_to_hbm [thread:$0]  %s77, 512, %s79, [#allocation3], 128, 128, 8
    $region24: #{tpu_custom_call.1} parent=1 // pred_fallthru
      _
    // Predicated region
    $region25: #{tpu_custom_call.1} parent=1 // pred_check
      _
    $region26: #{tpu_custom_call.1} parent=1 // pred_check_branch
      %86 = sbr.rel (0) target = $region28
    $region27: #{tpu_custom_call.1} parent=1 // pred_region
      %88 = dma.done [#allocation3], 512
    $region28: #{tpu_custom_call.1} parent=1 // pred_fallthru
      _
    %89 = vsyncpa [#allocation3], 1

</llo_original>
